<compile_context>
chip_gen: v7x
topology: tpu7x:2x2x1
jax: 0.10.0
libtpu: 0.0.40
codegen_flags: <defaults>
</compile_context>

<pallas_src>
import functools
import math

import jax
import jax.numpy as jnp
from jax import lax
from jax.experimental import pallas as pl
from jax.experimental.pallas import tpu as pltpu


def _cdiv(a, b):
    return (a + b - 1) // b


def _round_up(a, b):
    return _cdiv(a, b) * b


def _sublane_multiple(dtype):
    # f32 -> 8, bf16 -> 16, int8/fp8 -> 32 (packing along sublanes).
    return max(8, 32 // max(1, jnp.dtype(dtype).itemsize))


def _tpu_config():
    """Returns (target_block_elems, vmem_limit_bytes, multi_core).

    target_block_elems counts elements of the input block; the f32 working set
    per element (temporaries + double-buffered I/O) is what actually bounds
    VMEM, so sizing by element count is dtype-independent.
    """
    vmem = None
    try:
        info = pltpu.get_tpu_info()
        vmem = getattr(info, "vmem_capacity_bytes", None)
    except Exception:
        vmem = None
    if vmem is not None and vmem <= 96 * 1024 * 1024:
        # v7x-class: 64 MiB VMEM per TC, 2 TCs per chip.
        return 512 * 1024, 32 * 1024 * 1024, True
    if vmem is not None:
        # v5e / v6e class: 128 MiB VMEM, single TC.
        return 1024 * 1024, 64 * 1024 * 1024, False
    # Unknown (e.g. interpret mode): conservative middle ground.
    return 1024 * 1024, 48 * 1024 * 1024, False


# --------------------------- channels_last kernels --------------------------
def _ln_last_kernel(x_ref, w_ref, b_ref, o_ref, *, eps, inv_c):
    # x_ref: (tm, C) tile; normalize each row over C (lane axis).
    x = x_ref[...].astype(jnp.float32)
    mean = jnp.sum(x, axis=-1, keepdims=True) * inv_c
    xc = x - mean
    var = jnp.sum(xc * xc, axis=-1, keepdims=True) * inv_c
    inv = lax.rsqrt(var + eps)
    o_ref[...] = (xc * inv * w_ref[...] + b_ref[...]).astype(o_ref.dtype)


def _ln_last_folded_kernel(x_ref, p_ref, w_ref, b_ref, o_ref, *, eps):
    # x_ref: (tm, k*C) tile; each lane row holds k independent groups of C.
    # p_ref: (k*C, k*C) block-diagonal averaging matrix (1/C within a group).
    # x @ P directly yields the per-group mean broadcast back over the group.
    x = x_ref[...].astype(jnp.float32)
    p = p_ref[...]
    mean_b = jnp.dot(x, p, preferred_element_type=jnp.float32)
    xc = x - mean_b
    var_b = jnp.dot(xc * xc, p, preferred_element_type=jnp.float32)
    inv_b = lax.rsqrt(var_b + eps)
    o_ref[...] = (xc * inv_b * w_ref[...] + b_ref[...]).astype(o_ref.dtype)


def _pick_row_tile(rows, row_elems, target_elems, sub, multi_core):
    if rows <= sub:
        return rows  # block equals full first dim; no masking edge
    tm = max(sub, (target_elems // max(1, row_elems)) // sub * sub)
    tm = min(tm, _round_up(rows, sub))
    if multi_core and _cdiv(rows, tm) < 2:
        tm = max(sub, _round_up(_cdiv(rows, 2), sub))
    return tm


def _layernorm_channels_last_plain(x2d, weight, bias, eps, cfg):
    rows, c = x2d.shape
    target_elems, vmem_limit, multi_core = cfg
    sub = _sublane_multiple(x2d.dtype)
    tm = _pick_row_tile(rows, c, target_elems, sub, multi_core)
    grid = (_cdiv(rows, tm),)

    return pl.pallas_call(
        functools.partial(_ln_last_kernel, eps=eps, inv_c=1.0 / c),
        out_shape=jax.ShapeDtypeStruct((rows, c), x2d.dtype),
        grid_spec=pltpu.PrefetchScalarGridSpec(
            num_scalar_prefetch=0,
            grid=grid,
            in_specs=[
                pl.BlockSpec((tm, c), lambda i: (i, 0)),
                pl.BlockSpec((1, c), lambda i: (0, 0)),
                pl.BlockSpec((1, c), lambda i: (0, 0)),
            ],
            out_specs=pl.BlockSpec((tm, c), lambda i: (i, 0)),
        ),
        compiler_params=pltpu.CompilerParams(
            dimension_semantics=("parallel",),
            vmem_limit_bytes=vmem_limit,
        ),
    )(x2d, weight.reshape(1, c), bias.reshape(1, c))


def _layernorm_channels_last_folded(x2d, weight, bias, eps, k, cfg):
    rows, c = x2d.shape
    target_elems, vmem_limit, multi_core = cfg
    kc = k * c
    rows2 = rows // k
    # (rows, C) is row-major contiguous -> metadata-only reshape.
    x_f = x2d.reshape(rows2, kc)

    sub = _sublane_multiple(x2d.dtype)
    tm = _pick_row_tile(rows2, kc, target_elems, sub, multi_core)
    grid = (_cdiv(rows2, tm),)

    # Constant block-diagonal averaging matrix (kc x kc, f32, <= 1 MiB).
    gidx = jnp.arange(kc, dtype=jnp.int32) // c
    p = jnp.where(gidx[:, None] == gidx[None, :],
                  jnp.float32(1.0 / c), jnp.float32(0.0))
    w_t = jnp.tile(weight.reshape(1, c), (1, k))  # (1, kc)
    b_t = jnp.tile(bias.reshape(1, c), (1, k))

    out = pl.pallas_call(
        functools.partial(_ln_last_folded_kernel, eps=eps),
        out_shape=jax.ShapeDtypeStruct((rows2, kc), x2d.dtype),
        grid_spec=pltpu.PrefetchScalarGridSpec(
            num_scalar_prefetch=0,
            grid=grid,
            in_specs=[
                pl.BlockSpec((tm, kc), lambda i: (i, 0)),
                pl.BlockSpec((kc, kc), lambda i: (0, 0)),
                pl.BlockSpec((1, kc), lambda i: (0, 0)),
                pl.BlockSpec((1, kc), lambda i: (0, 0)),
            ],
            out_specs=pl.BlockSpec((tm, kc), lambda i: (i, 0)),
        ),
        compiler_params=pltpu.CompilerParams(
            dimension_semantics=("parallel",),
            vmem_limit_bytes=vmem_limit,
        ),
    )(x_f, p, w_t, b_t)
    return out.reshape(rows, c)


def _layernorm_channels_last(x2d, weight, bias, eps, cfg):
    rows, c = x2d.shape
    if c % 128 != 0:
        # Fold k rows so the lane extent becomes a multiple of 128.
        k = 128 // math.gcd(c, 128)
        kc = k * c
        # TODO(synk): handle rows % k != 0 by processing the bulk folded and
        # the small remainder via the plain path instead of falling back fully.
        if kc <= 512 and k > 1 and rows % k == 0 and rows // k >= 1:
            return _layernorm_channels_last_folded(x2d, weight, bias, eps, k, cfg)
    return _layernorm_channels_last_plain(x2d, weight, bias, eps, cfg)


# --------------------------- channels_first kernel --------------------------
def _ln_first_kernel(x_ref, w_ref, b_ref, o_ref, *, eps, inv_c):
    # x_ref: (bn, C, tl) block; channels on sublanes, spatial (H*W) on lanes.
    x = x_ref[...].astype(jnp.float32)
    mean = jnp.sum(x, axis=1, keepdims=True) * inv_c
    xc = x - mean
    var = jnp.sum(xc * xc, axis=1, keepdims=True) * inv_c
    inv = lax.rsqrt(var + eps)
    o_ref[...] = (xc * inv * w_ref[...] + b_ref[...]).astype(o_ref.dtype)


def _layernorm_channels_first(x, weight, bias, eps, cfg):
    """Normalize over the channel dim of NCHW without any wrapper transpose."""
    n, c, h, w_sp = x.shape
    hw = h * w_sp
    x3d = x.reshape(n, c, hw)  # contiguous reshape — no data movement
    target_elems, vmem_limit, multi_core = cfg

    w3 = weight.reshape(1, c, 1)
    b3 = bias.reshape(1, c, 1)
    per_image_elems = c * hw

    if per_image_elems <= target_elems:
        # Whole image(s) per grid step: one large fully-contiguous DMA.
        tl = hw
        bn = max(1, min(n, target_elems // max(1, per_image_elems)))
        if multi_core and _cdiv(n, bn) < 2 and n > 1:
            bn = _cdiv(n, 2)
        grid = (_cdiv(n, bn),)
        in_specs = [
            pl.BlockSpec((bn, c, tl), lambda i: (i, 0, 0)),
            pl.BlockSpec((1, c, 1), lambda i: (0, 0, 0)),
            pl.BlockSpec((1, c, 1), lambda i: (0, 0, 0)),
        ]
        out_specs = pl.BlockSpec((bn, c, tl), lambda i: (i, 0, 0))
        dims = ("parallel",)
    else:
        # Tile the spatial (lane) axis; pick tl so blocks are ~target sized and
        # the last block is not pathologically thin.
        nsteps = max(1, _cdiv(per_image_elems, target_elems))
        tl = _round_up(_cdiv(hw, nsteps), 128)
        if tl >= hw:
            tl = hw
        if multi_core and n * _cdiv(hw, tl) < 2:
            tl = _round_up(_cdiv(hw, 2), 128)
        grid = (n, _cdiv(hw, tl))
        in_specs = [
            pl.BlockSpec((1, c, tl), lambda i, j: (i, 0, j)),
            pl.BlockSpec((1, c, 1), lambda i, j: (0, 0, 0)),
            pl.BlockSpec((1, c, 1), lambda i, j: (0, 0, 0)),
        ]
        out_specs = pl.BlockSpec((1, c, tl), lambda i, j: (i, 0, j))
        dims = ("parallel", "parallel")

    out = pl.pallas_call(
        functools.partial(_ln_first_kernel, eps=eps, inv_c=1.0 / c),
        out_shape=jax.ShapeDtypeStruct((n, c, hw), x.dtype),
        grid_spec=pltpu.PrefetchScalarGridSpec(
            num_scalar_prefetch=0,
            grid=grid,
            in_specs=in_specs,
            out_specs=out_specs,
        ),
        compiler_params=pltpu.CompilerParams(
            dimension_semantics=dims,
            vmem_limit_bytes=vmem_limit,
        ),
    )(x3d, w3, b3)
    return out.reshape(n, c, h, w_sp)


# --------------------------------- module ----------------------------------
class LayerNormPallas:
    """JAX/Pallas equivalent of the ConvNeXt LayerNorm module."""

    def __init__(self, normalized_shape, eps=1e-6, data_format="channels_last"):
        if data_format not in ["channels_last", "channels_first"]:
            raise NotImplementedError
        self.eps = float(eps)
        self.data_format = data_format
        self.normalized_shape = (normalized_shape,)
        # Matches nn.Parameter(torch.ones/zeros).
        self.weight = jnp.ones((normalized_shape,), dtype=jnp.float32)
        self.bias = jnp.zeros((normalized_shape,), dtype=jnp.float32)

    def __call__(self, x):
        c = self.normalized_shape[0]
        cfg = _tpu_config()
        weight = self.weight.astype(jnp.float32)
        bias = self.bias.astype(jnp.float32)
        if self.data_format == "channels_last":
            assert x.shape[-1] == c
            lead = x.shape[:-1]
            x2d = x.reshape(-1, c)
            y2d = _layernorm_channels_last(x2d, weight, bias, self.eps, cfg)
            return y2d.reshape(*lead, c)
        else:  # channels_first, NCHW
            assert x.shape[1] == c
            return _layernorm_channels_first(x, weight, bias, self.eps, cfg)


# ------------------------------- references --------------------------------
def _reference_channels_first(x, weight, bias, eps):
    u = jnp.mean(x, axis=1, keepdims=True)
    s = jnp.mean((x - u) ** 2, axis=1, keepdims=True)
    xn = (x - u) / jnp.sqrt(s + eps)
    return weight[None, :, None, None] * xn + bias[None, :, None, None]


def _reference_channels_last(x, weight, bias, eps):
    u = jnp.mean(x, axis=-1, keepdims=True)
    s = jnp.mean((x - u) ** 2, axis=-1, keepdims=True)
    xn = (x - u) / jnp.sqrt(s + eps)
    return weight * xn + bias


if __name__ == "__main__":
    key = jax.random.PRNGKey(0)
    k1, k2, k3 = jax.random.split(key, 3)

    # channels_first: NCHW input, normalize over C=4 (batched whole-image path).
    x_cf = jax.random.normal(k1, (2, 4, 16, 16), dtype=jnp.float32)
    ln_cf = LayerNormPallas(4, eps=1e-6, data_format="channels_first")
    y_cf = jax.block_until_ready(ln_cf(x_cf))
    ref_cf = _reference_channels_first(x_cf, ln_cf.weight, ln_cf.bias, ln_cf.eps)
    assert y_cf.shape == x_cf.shape
    assert jnp.allclose(y_cf, ref_cf, atol=1e-5, rtol=1e-5)

    # channels_last, C=32: exercises the lane-dense folded path (k=4, kc=128).
    x_cl = jax.random.normal(k2, (2, 8, 32), dtype=jnp.float32)
    ln_cl = LayerNormPallas(32, eps=1e-6, data_format="channels_last")
    y_cl = jax.block_until_ready(ln_cl(x_cl))
    ref_cl = _reference_channels_last(x_cl, ln_cl.weight, ln_cl.bias, ln_cl.eps)
    assert y_cl.shape == x_cl.shape
    assert jnp.allclose(y_cl, ref_cl, atol=1e-5, rtol=1e-5)

    # channels_last, C=96 with rows not divisible by the fold factor:
    # exercises the plain fallback path.
    x_cl2 = jax.random.normal(k3, (2, 3, 96), dtype=jnp.float32)
    ln_cl2 = LayerNormPallas(96, eps=1e-6, data_format="channels_last")
    y_cl2 = jax.block_until_ready(ln_cl2(x_cl2))
    ref_cl2 = _reference_channels_last(x_cl2, ln_cl2.weight, ln_cl2.bias, ln_cl2.eps)
    assert y_cl2.shape == x_cl2.shape
    assert jnp.allclose(y_cl2, ref_cl2, atol=1e-5, rtol=1e-5)

    print("KERNEL_OK")
</pallas_src>

<mosaic_0001>
module attributes {stable_mosaic.version = 11 : i64} {
  func.func @_ln_first_kernel(%arg0: i32, %arg1: memref<2x4x256xf32, #tpu.memory_space<vmem>>, %arg2: memref<1x4x1xf32, #tpu.memory_space<vmem>>, %arg3: memref<1x4x1xf32, #tpu.memory_space<vmem>>, %arg4: memref<2x4x256xf32, #tpu.memory_space<vmem>>) attributes {dimension_semantics = [#tpu.dimension_semantics<parallel>], iteration_bounds = array<i64: 1>, scalar_prefetch = 0 : i64, scratch_operands = 0 : i64, tpu.core_type = #tpu.core_type<tc>, window_params = [{transform_indices = @transform_0, window_bounds = array<i64: 2, 4, 256>}, {pipeline_mode = #tpu.pipeline_mode<synchronous>, transform_indices = @transform_1, window_bounds = array<i64: 1, 4, 1>}, {pipeline_mode = #tpu.pipeline_mode<synchronous>, transform_indices = @transform_2, window_bounds = array<i64: 1, 4, 1>}, {transform_indices = @transform_3, window_bounds = array<i64: 2, 4, 256>}]} {
    %c0 = arith.constant 0 : index
    %c0_0 = arith.constant 0 : index
    %c0_1 = arith.constant 0 : index
    %0 = vector.load %arg1[%c0, %c0_0, %c0_1] : memref<2x4x256xf32, #tpu.memory_space<vmem>>, vector<2x4x256xf32>
    %cst = arith.constant dense<0.000000e+00> : vector<2x256xf32>
    %1 = vector.multi_reduction <add>, %0, %cst [1] : vector<2x4x256xf32> to vector<2x256xf32>
    %2 = vector.shape_cast %1 : vector<2x256xf32> to vector<2x1x256xf32>
    %cst_2 = arith.constant 2.500000e-01 : f32
    %3 = vector.broadcast %cst_2 : f32 to vector<2x1x256xf32>
    %4 = arith.mulf %2, %3 : vector<2x1x256xf32>
    %5 = vector.broadcast %4 : vector<2x1x256xf32> to vector<2x4x256xf32>
    %6 = arith.subf %0, %5 : vector<2x4x256xf32>
    %7 = arith.mulf %6, %6 : vector<2x4x256xf32>
    %cst_3 = arith.constant dense<0.000000e+00> : vector<2x256xf32>
    %8 = vector.multi_reduction <add>, %7, %cst_3 [1] : vector<2x4x256xf32> to vector<2x256xf32>
    %9 = vector.shape_cast %8 : vector<2x256xf32> to vector<2x1x256xf32>
    %cst_4 = arith.constant 2.500000e-01 : f32
    %10 = vector.broadcast %cst_4 : f32 to vector<2x1x256xf32>
    %11 = arith.mulf %9, %10 : vector<2x1x256xf32>
    %cst_5 = arith.constant 9.99999997E-7 : f32
    %12 = vector.broadcast %cst_5 : f32 to vector<2x1x256xf32>
    %13 = arith.addf %11, %12 : vector<2x1x256xf32>
    %14 = math.rsqrt %13 : vector<2x1x256xf32>
    %15 = vector.broadcast %14 : vector<2x1x256xf32> to vector<2x4x256xf32>
    %16 = arith.mulf %6, %15 : vector<2x4x256xf32>
    %c0_6 = arith.constant 0 : index
    %c0_7 = arith.constant 0 : index
    %c0_8 = arith.constant 0 : index
    %17 = vector.load %arg2[%c0_6, %c0_7, %c0_8] : memref<1x4x1xf32, #tpu.memory_space<vmem>>, vector<1x4x1xf32>
    %18 = vector.broadcast %17 : vector<1x4x1xf32> to vector<2x4x256xf32>
    %19 = arith.mulf %16, %18 : vector<2x4x256xf32>
    %c0_9 = arith.constant 0 : index
    %c0_10 = arith.constant 0 : index
    %c0_11 = arith.constant 0 : index
    %20 = vector.load %arg3[%c0_9, %c0_10, %c0_11] : memref<1x4x1xf32, #tpu.memory_space<vmem>>, vector<1x4x1xf32>
    %21 = vector.broadcast %20 : vector<1x4x1xf32> to vector<2x4x256xf32>
    %22 = arith.addf %19, %21 : vector<2x4x256xf32>
    %c0_12 = arith.constant 0 : index
    %c0_13 = arith.constant 0 : index
    %c0_14 = arith.constant 0 : index
    %23 = vector.load %arg4[%c0_12, %c0_13, %c0_14] : memref<2x4x256xf32, #tpu.memory_space<vmem>>, vector<2x4x256xf32>
    tpu.vector_store %arg4[%c0_12, %c0_13, %c0_14], %22 {strides = array<i32>} : memref<2x4x256xf32, #tpu.memory_space<vmem>>, vector<2x4x256xf32>,
    return
  }
  func.func @transform_0(%arg0: i32) -> (i32, i32, i32) {
    %c0_i32 = arith.constant 0 : i32
    %c0_i32_0 = arith.constant 0 : i32
    %c0_i32_1 = arith.constant 0 : i32
    return %arg0, %c0_i32, %c0_i32_0 : i32, i32, i32
  }
  func.func @transform_1(%arg0: i32) -> (i32, i32, i32) {
    %c0_i32 = arith.constant 0 : i32
    %c0_i32_0 = arith.constant 0 : i32
    %c0_i32_1 = arith.constant 0 : i32
    %c0_i32_2 = arith.constant 0 : i32
    return %c0_i32, %c0_i32_0, %c0_i32_1 : i32, i32, i32
  }
  func.func @transform_2(%arg0: i32) -> (i32, i32, i32) {
    %c0_i32 = arith.constant 0 : i32
    %c0_i32_0 = arith.constant 0 : i32
    %c0_i32_1 = arith.constant 0 : i32
    %c0_i32_2 = arith.constant 0 : i32
    return %c0_i32, %c0_i32_0, %c0_i32_1 : i32, i32, i32
  }
  func.func @transform_3(%arg0: i32) -> (i32, i32, i32) {
    %c0_i32 = arith.constant 0 : i32
    %c0_i32_0 = arith.constant 0 : i32
    %c0_i32_1 = arith.constant 0 : i32
    return %arg0, %c0_i32, %c0_i32_0 : i32, i32, i32
  }
}

</mosaic_0001>

<llo_original>
// kernel: tpu_custom_call.1
$region0: #{tpu_custom_call.1}
  #allocation0 [shape = 'u32[]', space=smem, size = 0x4, offset = 0x4, fixed_abs, tag = 'smem constant byte address 0x4 - core index']
  #allocation1 [shape = 'u32[144,128]{1,0:T(1,128)}', space=vmem, size = 0x12000, scoped, tag = 'internal scratch']
  %s0 = inlined_call_operand.hbm [shape: f32[2,4,256], index: 0, kind: input, shape index: {}]
  %s1 = inlined_call_operand.vmem [shape: f32[1,4,1], index: 1, kind: input, shape index: {}]
  %s2 = inlined_call_operand.vmem [shape: f32[1,4,1], index: 2, kind: input, shape index: {}]
  %s3 = inlined_call_operand.hbm [shape: f32[2,4,256], index: 3, kind: output, shape index: {}]
  %s4 = sld [smem:[#allocation0]]
  $region26: #{tpu_custom_call.1} parent=0
    _
  %s6 = ssub.s32 1, %s4
  %s7 = scalar_select 0, %s6, %s4
  $region1: #{tpu_custom_call.1} parent=0
    #allocation2 [shape = 'u8[8192]{0}', space=vmem, size = 0x2000, scoped, tag = 'input window, operand 0, single buffered']
    #allocation3 [shape = 's32[1]{0}', space=sflag, size = 0x4, scoped, tag = 'scoped memory for tpu_custom_call.1']
    #allocation4 [shape = 's32[1]{0}', space=sflag, size = 0x4, scoped, tag = 'scoped memory for tpu_custom_call.1']
    #allocation5 [shape = 'u8[8192]{0}', space=vmem, size = 0x2000, scoped, tag = 'output window, operand 0, single buffered']
    %8 = vsyncpa [#allocation3], 0
    %9 = vsyncpa [#allocation4], 0
    // Predicated region
    $region2: #{tpu_custom_call.1} parent=1 // pred_check
      _
    $region3: #{tpu_custom_call.1} parent=1 // pred_check_branch
      %11 = sbr.rel (0) target = $region5
    $region4: #{tpu_custom_call.1} parent=1 // pred_region
      %s13 = ssub.s32 256, 256
      %14 = vsyncadd [#allocation3], %s13
      %s15 = sshll.u32 [#allocation2], 4
      %s16 = int_to_ptr.vmem [resolvable:$true] %s15
      %21 = dma.hbm_to_vmem [thread:$0]  %s0, 256, %s16, [#allocation3], 128, 128, 8
    $region5: #{tpu_custom_call.1} parent=1 // pred_fallthru
      _
    // Predicated region
    $region6: #{tpu_custom_call.1} parent=1 // pred_check
      _
    $region7: #{tpu_custom_call.1} parent=1 // pred_check_branch
      %23 = sbr.rel (0) target = $region9
    $region8: #{tpu_custom_call.1} parent=1 // pred_region
      _
    $region9: #{tpu_custom_call.1} parent=1 // pred_fallthru
      _
    // Predicated region
    $region10: #{tpu_custom_call.1} parent=1 // pred_check
      _
    $region11: #{tpu_custom_call.1} parent=1 // pred_check_branch
      %25 = sbr.rel (0) target = $region13
    $region12: #{tpu_custom_call.1} parent=1 // pred_region
      _
    $region13: #{tpu_custom_call.1} parent=1 // pred_fallthru
      _
    // Predicated region
    $region14: #{tpu_custom_call.1} parent=1 // pred_check
      _
    $region15: #{tpu_custom_call.1} parent=1 // pred_check_branch
      %27 = sbr.rel (0) target = $region17
    $region16: #{tpu_custom_call.1} parent=1 // pred_region
      %28 = dma.done [#allocation3], 256
    $region17: #{tpu_custom_call.1} parent=1 // pred_fallthru
      _
    %v29 = vld [vmem:[#allocation2] sm:$0xff]
    %v30 = vld [vmem:[#allocation2 + $0x8] sm:$0xff]
    %v33 = vcombine.high %v29, %v29
    %v34 = vcombine.high %v30, %v30
    %vm37 = vcmask 1043456
    %v38 = vsel %vm37, %v29, 0.0
    %v39 = vrot.slane %v38, 4
    %v40 = vadd.f32 %v38, %v39
    %v41 = vrot.slane %v40, 2
    %v42 = vadd.f32 %v40, %v41
    %v43 = vrot.slane %v42, 1
    %v44 = vadd.f32 %v42, %v43
    %v45 = vsel %vm37, %v33, 0.0
    %v46 = vrot.slane %v45, 4
    %v47 = vadd.f32 %v45, %v46
    %v48 = vrot.slane %v47, 2
    %v49 = vadd.f32 %v47, %v48
    %v50 = vrot.slane %v49, 1
    %v51 = vadd.f32 %v49, %v50
    %v52 = vsel %vm37, %v30, 0.0
    %v53 = vrot.slane %v52, 4
    %v54 = vadd.f32 %v52, %v53
    %v55 = vrot.slane %v54, 2
    %v56 = vadd.f32 %v54, %v55
    %v57 = vrot.slane %v56, 1
    %v58 = vadd.f32 %v56, %v57
    %v59 = vsel %vm37, %v34, 0.0
    %v60 = vrot.slane %v59, 4
    %v61 = vadd.f32 %v59, %v60
    %v62 = vrot.slane %v61, 2
    %v63 = vadd.f32 %v61, %v62
    %v64 = vrot.slane %v63, 1
    %v65 = vadd.f32 %v63, %v64
    %v66 = vmul.f32 %v44, 0.25
    %v67 = vmul.f32 %v51, 0.25
    %v68 = vmul.f32 %v58, 0.25
    %v69 = vmul.f32 %v65, 0.25
    %v74 = vcombine.low %v66, %v67
    %v75 = vcombine.low %v68, %v69
    %v78 = vsub.f32 %v29, %v74
    %v79 = vsub.f32 %v30, %v75
    %v80 = vmul.f32 %v78, %v78
    %v81 = vmul.f32 %v79, %v79
    %v84 = vcombine.high %v80, %v80
    %v85 = vcombine.high %v81, %v81
    %v88 = vsel %vm37, %v80, 0.0
    %v89 = vrot.slane %v88, 4
    %v90 = vadd.f32 %v88, %v89
    %v91 = vrot.slane %v90, 2
    %v92 = vadd.f32 %v90, %v91
    %v93 = vrot.slane %v92, 1
    %v94 = vadd.f32 %v92, %v93
    %v95 = vsel %vm37, %v84, 0.0
    %v96 = vrot.slane %v95, 4
    %v97 = vadd.f32 %v95, %v96
    %v98 = vrot.slane %v97, 2
    %v99 = vadd.f32 %v97, %v98
    %v100 = vrot.slane %v99, 1
    %v101 = vadd.f32 %v99, %v100
    %v102 = vsel %vm37, %v81, 0.0
    %v103 = vrot.slane %v102, 4
    %v104 = vadd.f32 %v102, %v103
    %v105 = vrot.slane %v104, 2
    %v106 = vadd.f32 %v104, %v105
    %v107 = vrot.slane %v106, 1
    %v108 = vadd.f32 %v106, %v107
    %v109 = vsel %vm37, %v85, 0.0
    %v110 = vrot.slane %v109, 4
    %v111 = vadd.f32 %v109, %v110
    %v112 = vrot.slane %v111, 2
    %v113 = vadd.f32 %v111, %v112
    %v114 = vrot.slane %v113, 1
    %v115 = vadd.f32 %v113, %v114
    %v116 = vmul.f32 %v94, 0.25
    %v117 = vmul.f32 %v101, 0.25
    %v118 = vmul.f32 %v108, 0.25
    %v119 = vmul.f32 %v115, 0.25
    %v120 = vadd.f32 %v116, 1e-06
    %v121 = vadd.f32 %v117, 1e-06
    %v122 = vadd.f32 %v118, 1e-06
    %v123 = vadd.f32 %v119, 1e-06
    %v124 = vrsqrt.pop %v120
    %v125 = vrsqrt.pop %v121
    %v126 = vrsqrt.pop %v122
    %v127 = vrsqrt.pop %v123
    %v132 = vcombine.low %v124, %v125
    %v133 = vcombine.low %v126, %v127
    %v136 = vmul.f32 %v78, %v132
    %v137 = vmul.f32 %v79, %v133
    %v138 = vld [vmem:[%s1] sm:$0xf]
    %140 = vset.pattern.permute.xlu0 0
    %141 = vperm.xlu0 %140, %v138
    %v142 = vpop.permute.xlu0 %141
    %v144 = vunpack.c.l.s4 839922192
    %v145 = vunpack.c.0.s8 %v144
    %v146 = vlaneseq
    %v147 = vshrl.u32 %v146, 7
    %v148 = vsub.s32 %v145, %v147
    %v149 = vrot.slane %v142, %v148
    %v151 = vmul.f32 %v136, %v149
    %v152 = vmul.f32 %v137, %v149
    %v153 = vld [vmem:[%s2] sm:$0xf]
    %155 = vset.pattern.permute.xlu0 0
    %156 = vperm.xlu0 %155, %v153
    %v157 = vpop.permute.xlu0 %156
    %v159 = vunpack.c.l.s4 839922192
    %v160 = vunpack.c.0.s8 %v159
    %v161 = vlaneseq
    %v162 = vshrl.u32 %v161, 7
    %v163 = vsub.s32 %v160, %v162
    %v164 = vrot.slane %v157, %v163
    %v166 = vadd.f32 %v151, %v164
    %v167 = vadd.f32 %v152, %v164
    %168 = vst [vmem:[#allocation5] sm:$0xff] %v166
    %169 = vst [vmem:[#allocation5 + $0x8] sm:$0xff] %v167
    // Predicated region
    $region18: #{tpu_custom_call.1} parent=1 // pred_check
      _
    $region19: #{tpu_custom_call.1} parent=1 // pred_check_branch
      %171 = sbr.rel (0) target = $region21
    $region20: #{tpu_custom_call.1} parent=1 // pred_region
      %s173 = ssub.s32 256, 256
      %174 = vsyncadd [#allocation4], %s173
      %s175 = sshll.u32 [#allocation5], 4
      %s176 = int_to_ptr.vmem [resolvable:$true] %s175
      %181 = dma.vmem_to_hbm [thread:$0]  %s176, 256, %s3, [#allocation4], 128, 128, 8
    $region21: #{tpu_custom_call.1} parent=1 // pred_fallthru
      _
    // Predicated region
    $region22: #{tpu_custom_call.1} parent=1 // pred_check
      _
    $region23: #{tpu_custom_call.1} parent=1 // pred_check_branch
      %183 = sbr.rel (0) target = $region25
    $region24: #{tpu_custom_call.1} parent=1 // pred_region
      %184 = dma.done [#allocation4], 256
    $region25: #{tpu_custom_call.1} parent=1 // pred_fallthru
      _
    %185 = vsyncpa [#allocation3], 1
    %186 = vsyncpa [#allocation4], 1

</llo_original>
